<compile_context>
chip_gen: v5e
topology: v5e:2x2
jax: 0.10.0
libtpu: 0.0.40
codegen_flags: <defaults>
</compile_context>

<pallas_src>
import math
from functools import partial

import jax
import jax.numpy as jnp
from jax.experimental import pallas as pl
from jax.experimental.pallas import tpu as pltpu


def _fused_attn_kernel(x_ref, wqkv_ref, bqkv_ref, wo_ref, bo_ref, y_ref,
                       *, C, H, W, scale, mxu_dtype):
    f32 = jnp.float32
    x = x_ref[0]                                                   # (C, H*W) f32, one batch elem

    # --- q/k/v projections: single (3C,C)@(C,HW) MXU matmul (three 1x1 convs fused) ---
    qkv = jnp.dot(wqkv_ref[...].astype(mxu_dtype), x.astype(mxu_dtype),
                  preferred_element_type=f32) + bqkv_ref[...]       # (3C, HW) f32
    q = qkv[:C].reshape(C, H, W).astype(mxu_dtype)
    k = qkv[C:2 * C].reshape(C, H, W).astype(mxu_dtype)
    v = qkv[2 * C:].reshape(C, H, W).astype(mxu_dtype)

    # --- per-channel spatial attention, batched over all C channels at once ---
    # s[c,w,j] = sum_h q[c,h,w] * k[c,h,j]          == (q^T @ k) per channel
    s = jnp.einsum('chw,chj->cwj', q, k, preferred_element_type=f32) * scale
    # softmax over j in f32; denominator reciprocal on the EUP (its own VLIW slot)
    s = s - jnp.max(s, axis=-1, keepdims=True)
    p = jnp.exp(s)
    p = p * pl.reciprocal(jnp.sum(p, axis=-1, keepdims=True), approx=True)
    # o[c,w,h] = sum_j p[c,w,j] * v[c,h,j]          == (attn @ v^T) per channel
    o = jnp.einsum('cwj,chj->cwh', p.astype(mxu_dtype), v, preferred_element_type=f32)
    o_flat = o.reshape(C, W * H)                                    # lane-dense last dim (>=128)

    # --- output 1x1 conv + residual add ---
    y = jnp.dot(wo_ref[...].astype(mxu_dtype), o_flat.astype(mxu_dtype),
                preferred_element_type=f32) + bo_ref[...]
    # Residual adds x in (H,W) layout to the (W,H)-layout attention output positionally,
    # exactly like the PyTorch `out + x` (only type-checks because H == W).
    # TODO(synk): nn.Dropout train-mode stochastic masking not implemented (eval-mode identity).
    y_ref[0] = y + x


def qkv_attention_2d(x, params, *, mxu_dtype=jnp.float32):
    wq, bq, wk, bk, wv, bv, wo, bo = params
    B, C, H, W = x.shape
    assert H == W, "residual add requires square spatial dims (as in the PyTorch module)"
    HW = H * W
    f32 = jnp.float32

    x_flat = x.reshape(B, C, HW).astype(f32)
    # Fuse the three projection weights/biases into one operand pair.
    wqkv = jnp.concatenate([wq, wk, wv], axis=0).astype(f32)        # (3C, C)
    bqkv = jnp.concatenate([bq, bk, bv], axis=0).reshape(3 * C, 1).astype(f32)
    wo2 = wo.astype(f32)                                            # (C, C)
    bo2 = bo.reshape(C, 1).astype(f32)

    act_spec = pl.BlockSpec((1, C, HW), lambda b: (b, 0, 0))        # per-batch activation tile
    wqkv_spec = pl.BlockSpec((3 * C, C), lambda b: (0, 0))
    bqkv_spec = pl.BlockSpec((3 * C, 1), lambda b: (0, 0))
    wo_spec = pl.BlockSpec((C, C), lambda b: (0, 0))
    bo_spec = pl.BlockSpec((C, 1), lambda b: (0, 0))

    y_flat = pl.pallas_call(
        partial(_fused_attn_kernel, C=C, H=H, W=W,
                scale=1.0 / math.sqrt(C), mxu_dtype=mxu_dtype),
        out_shape=jax.ShapeDtypeStruct((B, C, HW), f32),
        grid=(B,),
        in_specs=[act_spec, wqkv_spec, bqkv_spec, wo_spec, bo_spec],
        out_specs=act_spec,
        compiler_params=pltpu.CompilerParams(dimension_semantics=("parallel",)),
    )(x_flat, wqkv, bqkv, wo2, bo2)

    return y_flat.reshape(B, C, H, W)


def _reference(x, params):
    """Pure-JAX replica of the PyTorch forward (eval mode)."""
    wq, bq, wk, bk, wv, bv, wo, bo = params
    C = x.shape[1]
    conv = lambda z, w, b: jnp.einsum('oc,bchw->bohw', w, z) + b[None, :, None, None]
    q = conv(x, wq, bq)
    k = conv(x, wk, bk)
    v = conv(x, wv, bv)
    s = jnp.einsum('bchw,bchj->bcwj', q, k) / math.sqrt(C)          # q.transpose(-1,-2) @ k
    a = jax.nn.softmax(s, axis=-1)
    o = jnp.einsum('bcwj,bchj->bcwh', a, v)                         # attn @ v.transpose(-1,-2)
    o = conv(o, wo, bo)
    return o + x


if __name__ == "__main__":
    B, C, H, W = 2, 4, 16, 16
    key = jax.random.PRNGKey(0)
    ks = jax.random.split(key, 9)
    bound = 1.0 / math.sqrt(C)  # PyTorch Conv2d default init bound (fan_in = C*1*1)
    u = lambda k, shape: jax.random.uniform(k, shape, jnp.float32, -bound, bound)
    params = (u(ks[0], (C, C)), u(ks[1], (C,)),   # query
              u(ks[2], (C, C)), u(ks[3], (C,)),   # key
              u(ks[4], (C, C)), u(ks[5], (C,)),   # value
              u(ks[6], (C, C)), u(ks[7], (C,)))   # out
    x = jax.random.normal(ks[8], (B, C, H, W), jnp.float32)

    y_ref = _reference(x, params)

    # f32-MXU path (exact up to the EUP approx-reciprocal, ~1e-4 relative).
    y = jax.block_until_ready(qkv_attention_2d(x, params, mxu_dtype=jnp.float32))
    assert y.shape == (B, C, H, W)
    err = float(jnp.max(jnp.abs(y - y_ref)))
    assert jnp.allclose(y, y_ref, atol=5e-3, rtol=5e-3), f"f32 path max abs err = {err}"

    # bf16-at-MXU path (v6e/v7x perf path: bf16 operands, f32 accumulation + f32 softmax).
    y_bf16 = jax.block_until_ready(qkv_attention_2d(x, params, mxu_dtype=jnp.bfloat16))
    err_bf16 = float(jnp.max(jnp.abs(y_bf16 - y_ref)))
    assert jnp.allclose(y_bf16, y_ref, atol=5e-2, rtol=5e-2), f"bf16 path max abs err = {err_bf16}"

    print("KERNEL_OK")
</pallas_src>

<mosaic_0001>
module attributes {stable_mosaic.version = 11 : i64} {
  func.func @_fused_attn_kernel(%arg0: i32, %arg1: memref<1x4x256xf32, #tpu.memory_space<vmem>>, %arg2: memref<12x4xf32, #tpu.memory_space<vmem>>, %arg3: memref<12x1xf32, #tpu.memory_space<vmem>>, %arg4: memref<4x4xf32, #tpu.memory_space<vmem>>, %arg5: memref<4x1xf32, #tpu.memory_space<vmem>>, %arg6: memref<1x4x256xf32, #tpu.memory_space<vmem>>) attributes {dimension_semantics = [#tpu.dimension_semantics<parallel>], iteration_bounds = array<i64: 2>, scalar_prefetch = 0 : i64, scratch_operands = 0 : i64, tpu.core_type = #tpu.core_type<tc>, window_params = [{transform_indices = @transform_0, window_bounds = array<i64: 1, 4, 256>}, {pipeline_mode = #tpu.pipeline_mode<synchronous>, transform_indices = @transform_1, window_bounds = array<i64: 12, 4>}, {pipeline_mode = #tpu.pipeline_mode<synchronous>, transform_indices = @transform_2, window_bounds = array<i64: 12, 1>}, {pipeline_mode = #tpu.pipeline_mode<synchronous>, transform_indices = @transform_3, window_bounds = array<i64: 4, 4>}, {pipeline_mode = #tpu.pipeline_mode<synchronous>, transform_indices = @transform_4, window_bounds = array<i64: 4, 1>}, {transform_indices = @transform_5, window_bounds = array<i64: 1, 4, 256>}]} {
    %c0 = arith.constant 0 : index
    %c0_0 = arith.constant 0 : index
    %c0_1 = arith.constant 0 : index
    %0 = vector.load %arg1[%c0, %c0_0, %c0_1] : memref<1x4x256xf32, #tpu.memory_space<vmem>>, vector<1x4x256xf32>
    %1 = vector.shape_cast %0 : vector<1x4x256xf32> to vector<4x256xf32>
    %c0_2 = arith.constant 0 : index
    %c0_3 = arith.constant 0 : index
    %2 = vector.load %arg2[%c0_2, %c0_3] : memref<12x4xf32, #tpu.memory_space<vmem>>, vector<12x4xf32>
    %cst = arith.constant dense<0.000000e+00> : vector<12x256xf32>
    %3 = tpu.matmul %2, %1, %cst {dimension_numbers = #tpu.dot_dimension_numbers<[1], [0], [0], [1], [0, 0, 1, 1], [], []>} : vector<12x4xf32>, vector<4x256xf32>, vector<12x256xf32> -> vector<12x256xf32>
    %c0_4 = arith.constant 0 : index
    %c0_5 = arith.constant 0 : index
    %4 = vector.load %arg3[%c0_4, %c0_5] : memref<12x1xf32, #tpu.memory_space<vmem>>, vector<12x1xf32>
    %5 = vector.broadcast %4 : vector<12x1xf32> to vector<12x256xf32>
    %6 = arith.addf %3, %5 : vector<12x256xf32>
    %7 = vector.extract_strided_slice %6 {offsets = [0, 0], sizes = [4, 256], strides = [1, 1]} : vector<12x256xf32> to vector<4x256xf32>
    %8 = vector.shape_cast %7 : vector<4x256xf32> to vector<4x16x16xf32>
    %9 = vector.extract_strided_slice %6 {offsets = [4, 0], sizes = [4, 256], strides = [1, 1]} : vector<12x256xf32> to vector<4x256xf32>
    %10 = vector.shape_cast %9 : vector<4x256xf32> to vector<4x16x16xf32>
    %11 = vector.extract_strided_slice %6 {offsets = [8, 0], sizes = [4, 256], strides = [1, 1]} : vector<12x256xf32> to vector<4x256xf32>
    %12 = vector.shape_cast %11 : vector<4x256xf32> to vector<4x16x16xf32>
    "tpu.trace_start"() <{level = 10 : i32, message = "chw,chj->cwj"}> : () -> ()
    %cst_6 = arith.constant dense<0.000000e+00> : vector<4x16x16xf32>
    %13 = tpu.matmul %8, %10, %cst_6 {dimension_numbers = #tpu.dot_dimension_numbers<[1], [1], [2], [2], [0, 0, 0, 2, 1, 2], [0], [0]>} : vector<4x16x16xf32>, vector<4x16x16xf32>, vector<4x16x16xf32> -> vector<4x16x16xf32>
    "tpu.trace_stop"() : () -> ()
    %cst_7 = arith.constant 5.000000e-01 : f32
    %14 = vector.broadcast %cst_7 : f32 to vector<4x16x16xf32>
    %15 = arith.mulf %13, %14 : vector<4x16x16xf32>
    %cst_8 = arith.constant dense<0xFF800000> : vector<4x16xf32>
    %16 = vector.multi_reduction <maximumf>, %15, %cst_8 [2] : vector<4x16x16xf32> to vector<4x16xf32>
    %17 = vector.shape_cast %16 : vector<4x16xf32> to vector<4x16x1xf32>
    %18 = vector.broadcast %17 : vector<4x16x1xf32> to vector<4x16x16xf32>
    %19 = arith.subf %15, %18 : vector<4x16x16xf32>
    %20 = math.exp %19 : vector<4x16x16xf32>
    %cst_9 = arith.constant dense<0.000000e+00> : vector<4x16xf32>
    %21 = vector.multi_reduction <add>, %20, %cst_9 [2] : vector<4x16x16xf32> to vector<4x16xf32>
    %22 = vector.shape_cast %21 : vector<4x16xf32> to vector<4x16x1xf32>
    %23 = tpu.reciprocal %22 {approx = true} : vector<4x16x1xf32> -> vector<4x16x1xf32>
    %24 = vector.broadcast %23 : vector<4x16x1xf32> to vector<4x16x16xf32>
    %25 = arith.mulf %20, %24 : vector<4x16x16xf32>
    "tpu.trace_start"() <{level = 10 : i32, message = "cwj,chj->cwh"}> : () -> ()
    %cst_10 = arith.constant dense<0.000000e+00> : vector<4x16x16xf32>
    %26 = tpu.matmul %25, %12, %cst_10 {dimension_numbers = #tpu.dot_dimension_numbers<[2], [2], [1], [1], [0, 0, 0, 1, 1, 1], [0], [0]>} : vector<4x16x16xf32>, vector<4x16x16xf32>, vector<4x16x16xf32> -> vector<4x16x16xf32>
    "tpu.trace_stop"() : () -> ()
    %27 = vector.shape_cast %26 : vector<4x16x16xf32> to vector<4x256xf32>
    %c0_11 = arith.constant 0 : index
    %c0_12 = arith.constant 0 : index
    %28 = vector.load %arg4[%c0_11, %c0_12] : memref<4x4xf32, #tpu.memory_space<vmem>>, vector<4x4xf32>
    %cst_13 = arith.constant dense<0.000000e+00> : vector<4x256xf32>
    %29 = tpu.matmul %28, %27, %cst_13 {dimension_numbers = #tpu.dot_dimension_numbers<[1], [0], [0], [1], [0, 0, 1, 1], [], []>} : vector<4x4xf32>, vector<4x256xf32>, vector<4x256xf32> -> vector<4x256xf32>
    %c0_14 = arith.constant 0 : index
    %c0_15 = arith.constant 0 : index
    %30 = vector.load %arg5[%c0_14, %c0_15] : memref<4x1xf32, #tpu.memory_space<vmem>>, vector<4x1xf32>
    %31 = vector.broadcast %30 : vector<4x1xf32> to vector<4x256xf32>
    %32 = arith.addf %29, %31 : vector<4x256xf32>
    %33 = arith.addf %32, %1 : vector<4x256xf32>
    %c0_16 = arith.constant 0 : index
    %c0_17 = arith.constant 0 : index
    %c0_18 = arith.constant 0 : index
    %34 = vector.load %arg6[%c0_16, %c0_17, %c0_18] : memref<1x4x256xf32, #tpu.memory_space<vmem>>, vector<1x4x256xf32>
    %35 = vector.shape_cast %34 : vector<1x4x256xf32> to vector<4x256xf32>
    %36 = vector.shape_cast %33 : vector<4x256xf32> to vector<1x4x256xf32>
    tpu.vector_store %arg6[%c0_16, %c0_17, %c0_18], %36 {strides = array<i32>} : memref<1x4x256xf32, #tpu.memory_space<vmem>>, vector<1x4x256xf32>,
    return
  }
  func.func @transform_0(%arg0: i32) -> (i32, i32, i32) {
    %c0_i32 = arith.constant 0 : i32
    %c0_i32_0 = arith.constant 0 : i32
    %c0_i32_1 = arith.constant 0 : i32
    return %arg0, %c0_i32, %c0_i32_0 : i32, i32, i32
  }
  func.func @transform_1(%arg0: i32) -> (i32, i32) {
    %c0_i32 = arith.constant 0 : i32
    %c0_i32_0 = arith.constant 0 : i32
    %c0_i32_1 = arith.constant 0 : i32
    return %c0_i32, %c0_i32_0 : i32, i32
  }
  func.func @transform_2(%arg0: i32) -> (i32, i32) {
    %c0_i32 = arith.constant 0 : i32
    %c0_i32_0 = arith.constant 0 : i32
    %c0_i32_1 = arith.constant 0 : i32
    return %c0_i32, %c0_i32_0 : i32, i32
  }
  func.func @transform_3(%arg0: i32) -> (i32, i32) {
    %c0_i32 = arith.constant 0 : i32
    %c0_i32_0 = arith.constant 0 : i32
    %c0_i32_1 = arith.constant 0 : i32
    return %c0_i32, %c0_i32_0 : i32, i32
  }
  func.func @transform_4(%arg0: i32) -> (i32, i32) {
    %c0_i32 = arith.constant 0 : i32
    %c0_i32_0 = arith.constant 0 : i32
    %c0_i32_1 = arith.constant 0 : i32
    return %c0_i32, %c0_i32_0 : i32, i32
  }
  func.func @transform_5(%arg0: i32) -> (i32, i32, i32) {
    %c0_i32 = arith.constant 0 : i32
    %c0_i32_0 = arith.constant 0 : i32
    %c0_i32_1 = arith.constant 0 : i32
    return %arg0, %c0_i32, %c0_i32_0 : i32, i32, i32
  }
}

</mosaic_0001>

<llo_original>
// kernel: tpu_custom_call.1
$region0: #{tpu_custom_call.1}
  #allocation0 [shape = 'u32[]', space=smem, size = 0x4, offset = 0x4, fixed_abs, tag = 'smem constant byte address 0x4 - core index']
  #allocation1 [shape = 'u32[72,128]{1,0:T(1,128)}', space=vmem, size = 0x9000, scoped, tag = 'internal scratch']
  %s0 = inlined_call_operand.vmem [shape: f32[2,4,256], index: 0, kind: input, shape index: {}]
  %s1 = inlined_call_operand.vmem [shape: f32[12,4], index: 1, kind: input, shape index: {}]
  %s2 = inlined_call_operand.vmem [shape: f32[12,1], index: 2, kind: input, shape index: {}]
  %s3 = inlined_call_operand.vmem [shape: f32[4,4], index: 3, kind: input, shape index: {}]
  %s4 = inlined_call_operand.vmem [shape: f32[4,1], index: 4, kind: input, shape index: {}]
  %s5 = inlined_call_operand.hbm [shape: f32[2,4,256], index: 5, kind: output, shape index: {}]
  %s6 = sld [smem:[#allocation0]]
  $region53: #{tpu_custom_call.1} parent=0
    _
  %s8 = ssub.s32 1, %s6
  %s9 = scalar_select 0, %s8, %s6
  $region1: #{tpu_custom_call.1} parent=0
    #allocation2 [shape = 'u8[8192]{0}', space=vmem, size = 0x2000, scoped, tag = 'output window, operand 0']
    #allocation3 [shape = 's32[2]{0}', space=sflag, size = 0x8, scoped, tag = 'scoped memory for tpu_custom_call.1']
    %10 = vsyncpa [#allocation3], 0
    %s11 = scalar_lea.sflag [#allocation3], 1
    %12 = vsyncpa %s11, 0
    loop: start=0, step=1, limit=4
    $region2: #{tpu_custom_call.1} parent=1 // loop_pre_header
      _
    $region3: #{tpu_custom_call.1} parent=1 // loop_header
      %s14 = sphi 0, %s18
      %p15 = scmp.ge.s32.totalorder %s14, 4
      %s24 = sphi 0, %s26
      %s27 = sphi 0, %s24
      %s28 = sphi 0, %s27
      %s44 = sphi 0, %s28
      %s48 = sphi 0, %s48
      %s50 = sphi 0, %s48
      %s51 = sphi 0, %s50
      %s65 = sphi 0, %s51
      %s69 = sphi 0, %s69
      %s71 = sphi 0, %s69
      %s72 = sphi 0, %s71
      %s86 = sphi 0, %s72
      %s90 = sphi 0, %s90
      %s92 = sphi 0, %s90
      %s93 = sphi 0, %s92
      %s107 = sphi 0, %s93
      %s111 = sphi 0, %s111
      %s113 = sphi 0, %s111
      %s114 = sphi 0, %s113
      %s128 = sphi 0, %s114
      %s134 = sphi 0, %s136
      %s137 = sphi 0, %s134
      %s138 = sphi 0, %s137
      %s154 = sphi 0, %s138
    $region4: #{tpu_custom_call.1} parent=1 // loop_header_branch
      %17 = sbr.rel (%p15) target = $region8
    $region5: #{tpu_custom_call.1} parent=1 // loop_body
      %s19 = ssub.s32 %s14, 1
      %s20 = ssub.s32 %s14, 2
      %s21 = sadd.s32 %s14, 1
      %s22 = ssub.s32 %s14, %s21
      %p23 = scmp.eq.s32.totalorder %s22, 0
      %s25 = sadd.s32 %s24, 1
      %s26 = scalar_select %p23, %s24, %s25
      %p29 = pneg %p23
      %p30 = scmp.eq.s32.totalorder %s14, 1
      %p31 = por %p29, %p30
      %p32 = scmp.ne.s32.totalorder %s24, %s27
      %p33 = scmp.eq.s32.totalorder %s14, 0
      %p34 = por %p32, %p33
      %p35 = scmp.ne.s32.totalorder %s24, %s27
      %p36 = scmp.eq.s32.totalorder %s19, 1
      %p37 = por %p35, %p36
      %p38 = scmp.ne.s32.totalorder %s27, %s28
      %p39 = scmp.eq.s32.totalorder %s19, 0
      %p40 = por %p38, %p39
      %p41 = scmp.ne.s32.totalorder %s27, %s28
      %p42 = scmp.eq.s32.totalorder %s20, 1
      %p43 = por %p41, %p42
      %p45 = scmp.ne.s32.totalorder %s28, %s44
      %p46 = scmp.eq.s32.totalorder %s20, 0
      %p47 = por %p45, %p46
      %s49 = sadd.s32 %s48, 1
      %p52 = scmp.eq.s32.totalorder %s14, 1
      %p53 = scmp.ne.s32.totalorder %s48, %s50
      %p54 = scmp.eq.s32.totalorder %s14, 0
      %p55 = por %p53, %p54
      %p56 = scmp.ne.s32.totalorder %s48, %s50
      %p57 = scmp.eq.s32.totalorder %s19, 1
      %p58 = por %p56, %p57
      %p59 = scmp.ne.s32.totalorder %s50, %s51
      %p60 = scmp.eq.s32.totalorder %s19, 0
      %p61 = por %p59, %p60
      %p62 = scmp.ne.s32.totalorder %s50, %s51
      %p63 = scmp.eq.s32.totalorder %s20, 1
      %p64 = por %p62, %p63
      %p66 = scmp.ne.s32.totalorder %s51, %s65
      %p67 = scmp.eq.s32.totalorder %s20, 0
      %p68 = por %p66, %p67
      %s70 = sadd.s32 %s69, 1
      %p73 = scmp.eq.s32.totalorder %s14, 1
      %p74 = scmp.ne.s32.totalorder %s69, %s71
      %p75 = scmp.eq.s32.totalorder %s14, 0
      %p76 = por %p74, %p75
      %p77 = scmp.ne.s32.totalorder %s69, %s71
      %p78 = scmp.eq.s32.totalorder %s19, 1
      %p79 = por %p77, %p78
      %p80 = scmp.ne.s32.totalorder %s71, %s72
      %p81 = scmp.eq.s32.totalorder %s19, 0
      %p82 = por %p80, %p81
      %p83 = scmp.ne.s32.totalorder %s71, %s72
      %p84 = scmp.eq.s32.totalorder %s20, 1
      %p85 = por %p83, %p84
      %p87 = scmp.ne.s32.totalorder %s72, %s86
      %p88 = scmp.eq.s32.totalorder %s20, 0
      %p89 = por %p87, %p88
      %s91 = sadd.s32 %s90, 1
      %p94 = scmp.eq.s32.totalorder %s14, 1
      %p95 = scmp.ne.s32.totalorder %s90, %s92
      %p96 = scmp.eq.s32.totalorder %s14, 0
      %p97 = por %p95, %p96
      %p98 = scmp.ne.s32.totalorder %s90, %s92
      %p99 = scmp.eq.s32.totalorder %s19, 1
      %p100 = por %p98, %p99
      %p101 = scmp.ne.s32.totalorder %s92, %s93
      %p102 = scmp.eq.s32.totalorder %s19, 0
      %p103 = por %p101, %p102
      %p104 = scmp.ne.s32.totalorder %s92, %s93
      %p105 = scmp.eq.s32.totalorder %s20, 1
      %p106 = por %p104, %p105
      %p108 = scmp.ne.s32.totalorder %s93, %s107
      %p109 = scmp.eq.s32.totalorder %s20, 0
      %p110 = por %p108, %p109
      %s112 = sadd.s32 %s111, 1
      %p115 = scmp.eq.s32.totalorder %s14, 1
      %p116 = scmp.ne.s32.totalorder %s111, %s113
      %p117 = scmp.eq.s32.totalorder %s14, 0
      %p118 = por %p116, %p117
      %p119 = scmp.ne.s32.totalorder %s111, %s113
      %p120 = scmp.eq.s32.totalorder %s19, 1
      %p121 = por %p119, %p120
      %p122 = scmp.ne.s32.totalorder %s113, %s114
      %p123 = scmp.eq.s32.totalorder %s19, 0
      %p124 = por %p122, %p123
      %p125 = scmp.ne.s32.totalorder %s113, %s114
      %p126 = scmp.eq.s32.totalorder %s20, 1
      %p127 = por %p125, %p126
      %p129 = scmp.ne.s32.totalorder %s114, %s128
      %p130 = scmp.eq.s32.totalorder %s20, 0
      %p131 = por %p129, %p130
      %s132 = ssub.s32 %s14, %s21
      %p133 = scmp.eq.s32.totalorder %s132, 0
      %s135 = sadd.s32 %s134, 1
      %s136 = scalar_select %p133, %s134, %s135
      %p139 = pneg %p133
      %p140 = scmp.eq.s32.totalorder %s14, 1
      %p141 = por %p139, %p140
      %p142 = scmp.ne.s32.totalorder %s134, %s137
      %p143 = scmp.eq.s32.totalorder %s14, 0
      %p144 = por %p142, %p143
      %p145 = scmp.ne.s32.totalorder %s134, %s137
      %p146 = scmp.eq.s32.totalorder %s19, 1
      %p147 = por %p145, %p146
      %p148 = scmp.ne.s32.totalorder %s137, %s138
      %p149 = scmp.eq.s32.totalorder %s19, 0
      %p150 = por %p148, %p149
      %p151 = scmp.ne.s32.totalorder %s137, %s138
      %p152 = scmp.eq.s32.totalorder %s20, 1
      %p153 = por %p151, %p152
      %p155 = scmp.ne.s32.totalorder %s138, %s154
      %p156 = scmp.eq.s32.totalorder %s20, 0
      %p157 = por %p155, %p156
      %p158 = scmp.le.s32.totalorder 1, %s14
      %p159 = scmp.lt.s32.totalorder %s14, 3
      %p160 = pnand %p158, %p159
      %p161 = pneg %p160
      // Predicated region
      $region9: #{tpu_custom_call.1} parent=5 // pred_check
        _
      $region10: #{tpu_custom_call.1} parent=5 // pred_check_branch
        %163 = sbr.rel (%p160) target = $region12
      $region11: #{tpu_custom_call.1} parent=5 // pred_region
        %s164 = ssub.s32 %s14, 1
        // Predicated region
        $region13: #{tpu_custom_call.1} parent=11 // pred_check
          %p165 = pneg %p61
        $region14: #{tpu_custom_call.1} parent=11 // pred_check_branch
          %167 = sbr.rel (%p165) target = $region16
        $region15: #{tpu_custom_call.1} parent=11 // pred_region
          _
        $region16: #{tpu_custom_call.1} parent=11 // pred_fallthru
          _
        // Predicated region
        $region17: #{tpu_custom_call.1} parent=11 // pred_check
          %p168 = pneg %p82
        $region18: #{tpu_custom_call.1} parent=11 // pred_check_branch
          %170 = sbr.rel (%p168) target = $region20
        $region19: #{tpu_custom_call.1} parent=11 // pred_region
          _
        $region20: #{tpu_custom_call.1} parent=11 // pred_fallthru
          _
        // Predicated region
        $region21: #{tpu_custom_call.1} parent=11 // pred_check
          %p171 = pneg %p103
        $region22: #{tpu_custom_call.1} parent=11 // pred_check_branch
          %173 = sbr.rel (%p171) target = $region24
        $region23: #{tpu_custom_call.1} parent=11 // pred_region
          _
        $region24: #{tpu_custom_call.1} parent=11 // pred_fallthru
          _
        // Predicated region
        $region25: #{tpu_custom_call.1} parent=11 // pred_check
          %p174 = pneg %p124
        $region26: #{tpu_custom_call.1} parent=11 // pred_check_branch
          %176 = sbr.rel (%p174) target = $region28
        $region27: #{tpu_custom_call.1} parent=11 // pred_region
          _
        $region28: #{tpu_custom_call.1} parent=11 // pred_fallthru
          _
      $region12: #{tpu_custom_call.1} parent=5 // pred_fallthru
        _
      %p177 = scmp.lt.s32.totalorder %s14, 2
      // Predicated region
      $region29: #{tpu_custom_call.1} parent=5 // pred_check
        %p178 = pneg %p177
      $region30: #{tpu_custom_call.1} parent=5 // pred_check_branch
        %180 = sbr.rel (%p178) target = $region32
      $region31: #{tpu_custom_call.1} parent=5 // pred_region
        // Predicated region
        $region33: #{tpu_custom_call.1} parent=31 // pred_check
          %p181 = pneg %p34
        $region34: #{tpu_custom_call.1} parent=31 // pred_check_branch
          %183 = sbr.rel (%p181) target = $region36
        $region35: #{tpu_custom_call.1} parent=31 // pred_region
          %p184 = scmp.lt.s32.totalorder %s14, 1
          %s185 = scalar_select %p184, %s14, 1
          %s186 = smul.addr %s185, 2
          %s187 = smul.addr %s186, 4
          %s188 = scalar_lea.vmem %s0, %s187
        $region36: #{tpu_custom_call.1} parent=31 // pred_fallthru
          _
      $region32: #{tpu_custom_call.1} parent=5 // pred_fallthru
        _
      %p189 = scmp.le.s32.totalorder 1, %s14
      %p190 = scmp.lt.s32.totalorder %s14, 3
      %p191 = pnand %p189, %p190
      %p192 = pneg %p191
      // Predicated region
      $region37: #{tpu_custom_call.1} parent=5 // pred_check
        _
      $region38: #{tpu_custom_call.1} parent=5 // pred_check_branch
        %194 = sbr.rel (%p191) target = $region40
      $region39: #{tpu_custom_call.1} parent=5 // pred_region
        %s195 = ssub.s32 %s14, 1
        %p196 = scmp.lt.s32.totalorder %s19, 1
        %s197 = scalar_select %p196, %s19, 1
        %s198 = smul.addr %s197, 2
        %s199 = smul.addr %s198, 4
        %s200 = scalar_lea.vmem %s0, %s199
        %p201 = pneg %p40
        %p202 = pneg %p37
        %p203 = pneg %p61
        %p204 = pneg %p58
        %p205 = pneg %p82
        %p206 = pneg %p79
        %p207 = pneg %p103
        %p208 = pneg %p100
        %p209 = pneg %p124
        %p210 = pneg %p121
        %p211 = pneg %p150
        %p212 = pneg %p147
        %s213 = sand.u32 %s137, 1
        %s214 = scalar_lea.sflag [#allocation3], %s213
        %s215 = sand.u32 %s137, 1
        %s216 = smul.addr %s215, 8
        %s217 = scalar_lea.vmem [#allocation2], %s216
        %p218 = scmp.lt.s32.totalorder %s19, 1
        %s219 = scalar_select %p218, %s19, 1
        %s220 = smul.addr %s219, 2
        %s221 = smul.addr %s220, 4
        %s222 = scalar_lea.vmem %s0, %s221
        %v223 = vld [vmem:[%s222] sm:$0xff]
        %v224 = vld [vmem:[%s1] sm:$0xff]
        %v225 = vld [vmem:[%s1 + $0x8] sm:$0xf]
        %v226 = vld [vmem:[%s2] sm:$0xff]
        %v227 = vld [vmem:[%s2 + $0x8] sm:$0xf]
        %229 = vset.pattern.permute.xlu0 0
        %230 = vperm.xlu0 %229, %v226
        %v231 = vpop.permute.xlu0 %230
        %234 = vset.pattern.permute.xlu0 0
        %235 = vperm.xlu0 %234, %v227
        %v236 = vpop.permute.xlu0 %235
        %239 = vst [vmem:[#allocation1] ss:$2 sm:$0xff] %v223
        %v240 = vld.sshfl [vmem:[#allocation1] sm:$0xff pattern:$0x75316420]
        %v241 = vld.sshfl [vmem:[#allocation1 + $0x8] sm:$0xff pattern:$0x75316420]
        %vm242 = vcmask 31744
        %v244 = vsel %vm242, %v224, 0
        %v247 = vsel %vm242, %v225, 0
        %vm249 = vcmask 1043456
        %v250 = vsel %vm249, %v240, 0
        %v252 = vsel %vm249, %v241, 0
        %254 = vmatpush.msra.mxu0 0.0
        %255 = vmatpush.msra.mxu0 0.0
        %256 = vmatpush.msra.mxu0 0.0
        %257 = vmatpush.msra.mxu0 0.0
        %258 = vmatpush.msra.mxu0 0.0
        %259 = vmatpush.msra.mxu0 0.0
        %260 = vmatpush.msra.mxu0 0.0
        %261 = vmatpush.msra.mxu0 0.0
        %262 = vmatpush.msra.mxu0 0.0
        %263 = vmatpush.msra.mxu0 0.0
        %264 = vmatpush.msra.mxu0 0.0
        %265 = vmatpush.msra.mxu0 0.0
        %266 = vmatpush.msra.mxu0 0.0
        %267 = vmatpush.msra.mxu0 0.0
        %268 = vmatpush.msra.mxu0 0.0
        %269 = vmatpush.msra.mxu0 %v250
        %270 = vmatmul.f32.gmra.mxu0 %v244
        %v271 = vpop.f32.mrf.mxu0
        %v272 = vadd.f32 %v231, %v271
        %273 = vmatmul.f32.gmra.mxu0 %v247
        %v274 = vpop.f32.mrf.mxu0
        %v275 = vadd.f32 %v236, %v274
        %276 = vdwg.mxu0
        %277 = vmatpush.msra.mxu0 0.0
        %278 = vmatpush.msra.mxu0 0.0
        %279 = vmatpush.msra.mxu0 0.0
        %280 = vmatpush.msra.mxu0 0.0
        %281 = vmatpush.msra.mxu0 0.0
        %282 = vmatpush.msra.mxu0 0.0
        %283 = vmatpush.msra.mxu0 0.0
        %284 = vmatpush.msra.mxu0 0.0
        %285 = vmatpush.msra.mxu0 0.0
        %286 = vmatpush.msra.mxu0 0.0
        %287 = vmatpush.msra.mxu0 0.0
        %288 = vmatpush.msra.mxu0 0.0
        %289 = vmatpush.msra.mxu0 0.0
        %290 = vmatpush.msra.mxu0 0.0
        %291 = vmatpush.msra.mxu0 0.0
        %292 = vmatpush.msra.mxu0 %v252
        %293 = vmatmul.f32.gmra.mxu0 %v244
        %v294 = vpop.f32.mrf.mxu0
        %v295 = vadd.f32 %v231, %v294
        %296 = vmatmul.f32.gmra.mxu0 %v247
        %v297 = vpop.f32.mrf.mxu0
        %v298 = vadd.f32 %v236, %v297
        %299 = vdwg.mxu0
        %301 = vrot.lane.b32.xlu0 %v272, 112
        %v302 = vpop.permute.xlu0 %301
        %304 = vrot.lane.b32.xlu0 %v272, 96
        %v305 = vpop.permute.xlu0 %304
        %307 = vrot.lane.b32.xlu0 %v272, 80
        %v308 = vpop.permute.xlu0 %307
        %310 = vrot.lane.b32.xlu0 %v272, 64
        %v311 = vpop.permute.xlu0 %310
        %313 = vrot.lane.b32.xlu0 %v272, 48
        %v314 = vpop.permute.xlu0 %313
        %316 = vrot.lane.b32.xlu0 %v272, 32
        %v317 = vpop.permute.xlu0 %316
        %319 = vrot.lane.b32.xlu0 %v272, 16
        %v320 = vpop.permute.xlu0 %319
        %323 = vrot.lane.b32.xlu0 %v295, 112
        %v324 = vpop.permute.xlu0 %323
        %326 = vrot.lane.b32.xlu0 %v295, 96
        %v327 = vpop.permute.xlu0 %326
        %329 = vrot.lane.b32.xlu0 %v295, 80
        %v330 = vpop.permute.xlu0 %329
        %332 = vrot.lane.b32.xlu0 %v295, 64
        %v333 = vpop.permute.xlu0 %332
        %335 = vrot.lane.b32.xlu0 %v295, 48
        %v336 = vpop.permute.xlu0 %335
        %338 = vrot.lane.b32.xlu0 %v295, 32
        %v339 = vpop.permute.xlu0 %338
        %341 = vrot.lane.b32.xlu0 %v295, 16
        %v342 = vpop.permute.xlu0 %341
        %v344 = vrot.slane %v305, 4
        %vm345 = vcmask 1047556
        %v346 = vsel %vm345, %v344, %v272
        %v348 = vunpack.c.l.s4 1983009808
        %v349 = vunpack.c.0.s8 %v348
        %v350 = vperm.slane %v346, %v349
        %v351 = vrot.slane %v308, 4
        %v352 = vsel %vm345, %v351, %v302
        %v354 = vunpack.c.l.s4 1983009808
        %v355 = vunpack.c.0.s8 %v354
        %v356 = vperm.slane %v352, %v355
        %v357 = vrot.slane %v317, 4
        %v358 = vsel %vm345, %v357, %v311
        %v360 = vunpack.c.l.s4 1983009808
        %v361 = vunpack.c.0.s8 %v360
        %v362 = vperm.slane %v358, %v361
        %v363 = vrot.slane %v320, 4
        %v364 = vsel %vm345, %v363, %v314
        %v366 = vunpack.c.l.s4 1983009808
        %v367 = vunpack.c.0.s8 %v366
        %v368 = vperm.slane %v364, %v367
        %v369 = vrot.slane %v356, 4
        %v370 = vsel %vm345, %v369, %v350
        %v371 = vrot.slane %v350, 4
        %v372 = vsel %vm345, %v356, %v371
        %v374 = vunpack.c.l.s4 1934713408
        %v375 = vunpack.c.0.s8 %v374
        %v376 = vperm.slane %v370, %v375
        %v378 = vunpack.c.l.s4 1934713408
        %v379 = vunpack.c.0.s8 %v378
        %v380 = vperm.slane %v372, %v379
        %v381 = vrot.slane %v368, 4
        %v382 = vsel %vm345, %v381, %v362
        %v383 = vrot.slane %v362, 4
        %v384 = vsel %vm345, %v368, %v383
        %v386 = vunpack.c.l.s4 1934713408
        %v387 = vunpack.c.0.s8 %v386
        %v388 = vperm.slane %v382, %v387
        %v390 = vunpack.c.l.s4 1934713408
        %v391 = vunpack.c.0.s8 %v390
        %v392 = vperm.slane %v384, %v391
        %v393 = vrot.slane %v388, 4
        %v394 = vsel %vm345, %v393, %v376
        %v395 = vrot.slane %v376, 4
        %v396 = vsel %vm345, %v388, %v395
        %v397 = vrot.slane %v392, 4
        %v398 = vsel %vm345, %v397, %v380
        %v399 = vrot.slane %v380, 4
        %v400 = vsel %vm345, %v392, %v399
        %v401 = vrot.slane %v327, 4
        %v402 = vsel %vm345, %v401, %v295
        %v404 = vunpack.c.l.s4 1983009808
        %v405 = vunpack.c.0.s8 %v404
        %v406 = vperm.slane %v402, %v405
        %v407 = vrot.slane %v330, 4
        %v408 = vsel %vm345, %v407, %v324
        %v410 = vunpack.c.l.s4 1983009808
        %v411 = vunpack.c.0.s8 %v410
        %v412 = vperm.slane %v408, %v411
        %v413 = vrot.slane %v339, 4
        %v414 = vsel %vm345, %v413, %v333
        %v416 = vunpack.c.l.s4 1983009808
        %v417 = vunpack.c.0.s8 %v416
        %v418 = vperm.slane %v414, %v417
        %v419 = vrot.slane %v342, 4
        %v420 = vsel %vm345, %v419, %v336
        %v422 = vunpack.c.l.s4 1983009808
        %v423 = vunpack.c.0.s8 %v422
        %v424 = vperm.slane %v420, %v423
        %v425 = vrot.slane %v412, 4
        %v426 = vsel %vm345, %v425, %v406
        %v427 = vrot.slane %v406, 4
        %v428 = vsel %vm345, %v412, %v427
        %v430 = vunpack.c.l.s4 1934713408
        %v431 = vunpack.c.0.s8 %v430
        %v432 = vperm.slane %v426, %v431
        %v434 = vunpack.c.l.s4 1934713408
        %v435 = vunpack.c.0.s8 %v434
        %v436 = vperm.slane %v428, %v435
        %v437 = vrot.slane %v424, 4
        %v438 = vsel %vm345, %v437, %v418
        %v439 = vrot.slane %v418, 4
        %v440 = vsel %vm345, %v424, %v439
        %v442 = vunpack.c.l.s4 1934713408
        %v443 = vunpack.c.0.s8 %v442
        %v444 = vperm.slane %v438, %v443
        %v446 = vunpack.c.l.s4 1934713408
        %v447 = vunpack.c.0.s8 %v446
        %v448 = vperm.slane %v440, %v447
        %v449 = vrot.slane %v444, 4
        %v450 = vsel %vm345, %v449, %v432
        %v451 = vrot.slane %v432, 4
        %v452 = vsel %vm345, %v444, %v451
        %v453 = vrot.slane %v448, 4
        %v454 = vsel %vm345, %v453, %v436
        %v455 = vrot.slane %v436, 4
        %v456 = vsel %vm345, %v448, %v455
        %v457 = vrot.slane %v272, 4
        %v458 = vrot.slane %v302, 4
        %v459 = vrot.slane %v305, 4
        %v460 = vrot.slane %v308, 4
        %v461 = vrot.slane %v311, 4
        %v462 = vrot.slane %v314, 4
        %v463 = vrot.slane %v317, 4
        %v464 = vrot.slane %v320, 4
        %v465 = vrot.slane %v295, 4
        %v466 = vrot.slane %v324, 4
        %v467 = vrot.slane %v327, 4
        %v468 = vrot.slane %v330, 4
        %v469 = vrot.slane %v333, 4
        %v470 = vrot.slane %v336, 4
        %v471 = vrot.slane %v339, 4
        %v472 = vrot.slane %v342, 4
        %v489 = vrot.slane %v459, 4
        %v490 = vsel %vm345, %v489, %v457
        %v492 = vunpack.c.l.s4 1983009808
        %v493 = vunpack.c.0.s8 %v492
        %v494 = vperm.slane %v490, %v493
        %v495 = vrot.slane %v460, 4
        %v496 = vsel %vm345, %v495, %v458
        %v498 = vunpack.c.l.s4 1983009808
        %v499 = vunpack.c.0.s8 %v498
        %v500 = vperm.slane %v496, %v499
        %v501 = vrot.slane %v463, 4
        %v502 = vsel %vm345, %v501, %v461
        %v504 = vunpack.c.l.s4 1983009808
        %v505 = vunpack.c.0.s8 %v504
        %v506 = vperm.slane %v502, %v505
        %v507 = vrot.slane %v464, 4
        %v508 = vsel %vm345, %v507, %v462
        %v510 = vunpack.c.l.s4 1983009808
        %v511 = vunpack.c.0.s8 %v510
        %v512 = vperm.slane %v508, %v511
        %v513 = vrot.slane %v500, 4
        %v514 = vsel %vm345, %v513, %v494
        %v515 = vrot.slane %v494, 4
        %v516 = vsel %vm345, %v500, %v515
        %v518 = vunpack.c.l.s4 1934713408
        %v519 = vunpack.c.0.s8 %v518
        %v520 = vperm.slane %v514, %v519
        %v522 = vunpack.c.l.s4 1934713408
        %v523 = vunpack.c.0.s8 %v522
        %v524 = vperm.slane %v516, %v523
        %v525 = vrot.slane %v512, 4
        %v526 = vsel %vm345, %v525, %v506
        %v527 = vrot.slane %v506, 4
        %v528 = vsel %vm345, %v512, %v527
        %v530 = vunpack.c.l.s4 1934713408
        %v531 = vunpack.c.0.s8 %v530
        %v532 = vperm.slane %v526, %v531
        %v534 = vunpack.c.l.s4 1934713408
        %v535 = vunpack.c.0.s8 %v534
        %v536 = vperm.slane %v528, %v535
        %v537 = vrot.slane %v532, 4
        %v538 = vsel %vm345, %v537, %v520
        %v539 = vrot.slane %v520, 4
        %v540 = vsel %vm345, %v532, %v539
        %v541 = vrot.slane %v536, 4
        %v542 = vsel %vm345, %v541, %v524
        %v543 = vrot.slane %v524, 4
        %v544 = vsel %vm345, %v536, %v543
        %v545 = vrot.slane %v467, 4
        %v546 = vsel %vm345, %v545, %v465
        %v548 = vunpack.c.l.s4 1983009808
        %v549 = vunpack.c.0.s8 %v548
        %v550 = vperm.slane %v546, %v549
        %v551 = vrot.slane %v468, 4
        %v552 = vsel %vm345, %v551, %v466
        %v554 = vunpack.c.l.s4 1983009808
        %v555 = vunpack.c.0.s8 %v554
        %v556 = vperm.slane %v552, %v555
        %v557 = vrot.slane %v471, 4
        %v558 = vsel %vm345, %v557, %v469
        %v560 = vunpack.c.l.s4 1983009808
        %v561 = vunpack.c.0.s8 %v560
        %v562 = vperm.slane %v558, %v561
        %v563 = vrot.slane %v472, 4
        %v564 = vsel %vm345, %v563, %v470
        %v566 = vunpack.c.l.s4 1983009808
        %v567 = vunpack.c.0.s8 %v566
        %v568 = vperm.slane %v564, %v567
        %v569 = vrot.slane %v556, 4
        %v570 = vsel %vm345, %v569, %v550
        %v571 = vrot.slane %v550, 4
        %v572 = vsel %vm345, %v556, %v571
        %v574 = vunpack.c.l.s4 1934713408
        %v575 = vunpack.c.0.s8 %v574
        %v576 = vperm.slane %v570, %v575
        %v578 = vunpack.c.l.s4 1934713408
        %v579 = vunpack.c.0.s8 %v578
        %v580 = vperm.slane %v572, %v579
        %v581 = vrot.slane %v568, 4
        %v582 = vsel %vm345, %v581, %v562
        %v583 = vrot.slane %v562, 4
        %v584 = vsel %vm345, %v568, %v583
        %v586 = vunpack.c.l.s4 1934713408
        %v587 = vunpack.c.0.s8 %v586
        %v588 = vperm.slane %v582, %v587
        %v590 = vunpack.c.l.s4 1934713408
        %v591 = vunpack.c.0.s8 %v590
        %v592 = vperm.slane %v584, %v591
        %v593 = vrot.slane %v588, 4
        %v594 = vsel %vm345, %v593, %v576
        %v595 = vrot.slane %v576, 4
        %v596 = vsel %vm345, %v588, %v595
        %v597 = vrot.slane %v592, 4
        %v598 = vsel %vm345, %v597, %v580
        %v599 = vrot.slane %v580, 4
        %v600 = vsel %vm345, %v592, %v599
        %602 = vrot.lane.b32.xlu0 %v275, 112
        %v603 = vpop.permute.xlu0 %602
        %605 = vrot.lane.b32.xlu0 %v275, 96
        %v606 = vpop.permute.xlu0 %605
        %608 = vrot.lane.b32.xlu0 %v275, 80
        %v609 = vpop.permute.xlu0 %608
        %611 = vrot.lane.b32.xlu0 %v275, 64
        %v612 = vpop.permute.xlu0 %611
        %614 = vrot.lane.b32.xlu0 %v275, 48
        %v615 = vpop.permute.xlu0 %614
        %617 = vrot.lane.b32.xlu0 %v275, 32
        %v618 = vpop.permute.xlu0 %617
        %620 = vrot.lane.b32.xlu0 %v275, 16
        %v621 = vpop.permute.xlu0 %620
        %624 = vrot.lane.b32.xlu0 %v298, 112
        %v625 = vpop.permute.xlu0 %624
        %627 = vrot.lane.b32.xlu0 %v298, 96
        %v628 = vpop.permute.xlu0 %627
        %630 = vrot.lane.b32.xlu0 %v298, 80
        %v631 = vpop.permute.xlu0 %630
        %633 = vrot.lane.b32.xlu0 %v298, 64
        %v634 = vpop.permute.xlu0 %633
        %636 = vrot.lane.b32.xlu0 %v298, 48
        %v637 = vpop.permute.xlu0 %636
        %639 = vrot.lane.b32.xlu0 %v298, 32
        %v640 = vpop.permute.xlu0 %639
        %642 = vrot.lane.b32.xlu0 %v298, 16
        %v643 = vpop.permute.xlu0 %642
        %v645 = vrot.slane %v606, 4
        %v646 = vsel %vm345, %v645, %v275
        %v648 = vunpack.c.l.s4 1983009808
        %v649 = vunpack.c.0.s8 %v648
        %v650 = vperm.slane %v646, %v649
        %v651 = vrot.slane %v609, 4
        %v652 = vsel %vm345, %v651, %v603
        %v654 = vunpack.c.l.s4 1983009808
        %v655 = vunpack.c.0.s8 %v654
        %v656 = vperm.slane %v652, %v655
        %v657 = vrot.slane %v618, 4
        %v658 = vsel %vm345, %v657, %v612
        %v660 = vunpack.c.l.s4 1983009808
        %v661 = vunpack.c.0.s8 %v660
        %v662 = vperm.slane %v658, %v661
        %v663 = vrot.slane %v621, 4
        %v664 = vsel %vm345, %v663, %v615
        %v666 = vunpack.c.l.s4 1983009808
        %v667 = vunpack.c.0.s8 %v666
        %v668 = vperm.slane %v664, %v667
        %v669 = vrot.slane %v656, 4
        %v670 = vsel %vm345, %v669, %v650
        %v671 = vrot.slane %v650, 4
        %v672 = vsel %vm345, %v656, %v671
        %v674 = vunpack.c.l.s4 1934713408
        %v675 = vunpack.c.0.s8 %v674
        %v676 = vperm.slane %v670, %v675
        %v678 = vunpack.c.l.s4 1934713408
        %v679 = vunpack.c.0.s8 %v678
        %v680 = vperm.slane %v672, %v679
        %v681 = vrot.slane %v668, 4
        %v682 = vsel %vm345, %v681, %v662
        %v683 = vrot.slane %v662, 4
        %v684 = vsel %vm345, %v668, %v683
        %v686 = vunpack.c.l.s4 1934713408
        %v687 = vunpack.c.0.s8 %v686
        %v688 = vperm.slane %v682, %v687
        %v690 = vunpack.c.l.s4 1934713408
        %v691 = vunpack.c.0.s8 %v690
        %v692 = vperm.slane %v684, %v691
        %v693 = vrot.slane %v688, 4
        %v694 = vsel %vm345, %v693, %v676
        %v695 = vrot.slane %v676, 4
        %v696 = vsel %vm345, %v688, %v695
        %v697 = vrot.slane %v692, 4
        %v698 = vsel %vm345, %v697, %v680
        %v699 = vrot.slane %v680, 4
        %v700 = vsel %vm345, %v692, %v699
        %v701 = vrot.slane %v628, 4
        %v702 = vsel %vm345, %v701, %v298
        %v704 = vunpack.c.l.s4 1983009808
        %v705 = vunpack.c.0.s8 %v704
        %v706 = vperm.slane %v702, %v705
        %v707 = vrot.slane %v631, 4
        %v708 = vsel %vm345, %v707, %v625
        %v710 = vunpack.c.l.s4 1983009808
        %v711 = vunpack.c.0.s8 %v710
        %v712 = vperm.slane %v708, %v711
        %v713 = vrot.slane %v640, 4
        %v714 = vsel %vm345, %v713, %v634
        %v716 = vunpack.c.l.s4 1983009808
        %v717 = vunpack.c.0.s8 %v716
        %v718 = vperm.slane %v714, %v717
        %v719 = vrot.slane %v643, 4
        %v720 = vsel %vm345, %v719, %v637
        %v722 = vunpack.c.l.s4 1983009808
        %v723 = vunpack.c.0.s8 %v722
        %v724 = vperm.slane %v720, %v723
        %v725 = vrot.slane %v712, 4
        %v726 = vsel %vm345, %v725, %v706
        %v727 = vrot.slane %v706, 4
        %v728 = vsel %vm345, %v712, %v727
        %v730 = vunpack.c.l.s4 1934713408
        %v731 = vunpack.c.0.s8 %v730
        %v732 = vperm.slane %v726, %v731
        %v734 = vunpack.c.l.s4 1934713408
        %v735 = vunpack.c.0.s8 %v734
        %v736 = vperm.slane %v728, %v735
        %v737 = vrot.slane %v724, 4
        %v738 = vsel %vm345, %v737, %v718
        %v739 = vrot.slane %v718, 4
        %v740 = vsel %vm345, %v724, %v739
        %v742 = vunpack.c.l.s4 1934713408
        %v743 = vunpack.c.0.s8 %v742
        %v744 = vperm.slane %v738, %v743
        %v746 = vunpack.c.l.s4 1934713408
        %v747 = vunpack.c.0.s8 %v746
        %v748 = vperm.slane %v740, %v747
        %v749 = vrot.slane %v744, 4
        %v750 = vsel %vm345, %v749, %v732
        %v751 = vrot.slane %v732, 4
        %v752 = vsel %vm345, %v744, %v751
        %v753 = vrot.slane %v748, 4
        %v754 = vsel %vm345, %v753, %v736
        %v755 = vrot.slane %v736, 4
        %v756 = vsel %vm345, %v748, %v755
        %757 = vxpose.xlu0.b32.start [1/16] %v394, 128
        %758 = vxpose.xlu0.b32.cont [2/16] %v450, 128
        %759 = vxpose.xlu0.b32.cont [3/16] 0.0, 128
        %760 = vxpose.xlu0.b32.cont [4/16] 0.0, 128
        %761 = vxpose.xlu0.b32.cont [5/16] 0.0, 128
        %762 = vxpose.xlu0.b32.cont [6/16] 0.0, 128
        %763 = vxpose.xlu0.b32.cont [7/16] 0.0, 128
        %764 = vxpose.xlu0.b32.cont [8/16] 0.0, 128
        %765 = vxpose.xlu0.b32.cont [9/16] 0.0, 128
        %766 = vxpose.xlu0.b32.cont [10/16] 0.0, 128
        %767 = vxpose.xlu0.b32.cont [11/16] 0.0, 128
        %768 = vxpose.xlu0.b32.cont [12/16] 0.0, 128
        %769 = vxpose.xlu0.b32.cont [13/16] 0.0, 128
        %770 = vxpose.xlu0.b32.cont [14/16] 0.0, 128
        %771 = vxpose.xlu0.b32.cont [15/16] 0.0, 128
        %772 = vxpose.xlu0.b32.end [16/16] 0.0, 128
        %v773 = vpop.trf.xlu0
        %v774 = vpop.trf.xlu0
        %v775 = vpop.trf.xlu0
        %v776 = vpop.trf.xlu0
        %v777 = vpop.trf.xlu0
        %v778 = vpop.trf.xlu0
        %v779 = vpop.trf.xlu0
        %v780 = vpop.trf.xlu0
        %v781 = vpop.trf.xlu0
        %v782 = vpop.trf.xlu0
        %v783 = vpop.trf.xlu0
        %v784 = vpop.trf.xlu0
        %v785 = vpop.trf.xlu0
        %v786 = vpop.trf.xlu0
        %v787 = vpop.trf.xlu0
        %v788 = vpop.trf.xlu0
        %vm789 = vcmask 130048
        %v791 = vsel %vm789, %v773, 0
        %v794 = vsel %vm789, %v774, 0
        %796 = vmatpush.msra.mxu0 0.0
        %797 = vmatpush.msra.mxu0 0.0
        %798 = vmatpush.msra.mxu0 0.0
        %799 = vmatpush.msra.mxu0 0.0
        %800 = vmatpush.msra.mxu0 0.0
        %801 = vmatpush.msra.mxu0 0.0
        %802 = vmatpush.msra.mxu0 0.0
        %803 = vmatpush.msra.mxu0 0.0
        %804 = vmatpush.msra.mxu0 0.0
        %805 = vmatpush.msra.mxu0 0.0
        %806 = vmatpush.msra.mxu0 0.0
        %807 = vmatpush.msra.mxu0 0.0
        %808 = vmatpush.msra.mxu0 0.0
        %809 = vmatpush.msra.mxu0 0.0
        %810 = vmatpush.msra.mxu0 %v594
        %811 = vmatpush.msra.mxu0 %v538
        %812 = vmatmul.f32.gmra.mxu0 %v791
        %v813 = vpop.f32.mrf.mxu0
        %v814 = vadd.f32 0.0, %v813
        %815 = vmatmul.f32.gmra.mxu0 %v794
        %v816 = vpop.f32.mrf.mxu0
        %v817 = vadd.f32 0.0, %v816
        %818 = vdwg.mxu0
        %819 = vxpose.xlu0.b32.start [1/16] %v396, 128
        %820 = vxpose.xlu0.b32.cont [2/16] %v452, 128
        %821 = vxpose.xlu0.b32.cont [3/16] 0.0, 128
        %822 = vxpose.xlu0.b32.cont [4/16] 0.0, 128
        %823 = vxpose.xlu0.b32.cont [5/16] 0.0, 128
        %824 = vxpose.xlu0.b32.cont [6/16] 0.0, 128
        %825 = vxpose.xlu0.b32.cont [7/16] 0.0, 128
        %826 = vxpose.xlu0.b32.cont [8/16] 0.0, 128
        %827 = vxpose.xlu0.b32.cont [9/16] 0.0, 128
        %828 = vxpose.xlu0.b32.cont [10/16] 0.0, 128
        %829 = vxpose.xlu0.b32.cont [11/16] 0.0, 128
        %830 = vxpose.xlu0.b32.cont [12/16] 0.0, 128
        %831 = vxpose.xlu0.b32.cont [13/16] 0.0, 128
        %832 = vxpose.xlu0.b32.cont [14/16] 0.0, 128
        %833 = vxpose.xlu0.b32.cont [15/16] 0.0, 128
        %834 = vxpose.xlu0.b32.end [16/16] 0.0, 128
        %v835 = vpop.trf.xlu0
        %v836 = vpop.trf.xlu0
        %v837 = vpop.trf.xlu0
        %v838 = vpop.trf.xlu0
        %v839 = vpop.trf.xlu0
        %v840 = vpop.trf.xlu0
        %v841 = vpop.trf.xlu0
        %v842 = vpop.trf.xlu0
        %v843 = vpop.trf.xlu0
        %v844 = vpop.trf.xlu0
        %v845 = vpop.trf.xlu0
        %v846 = vpop.trf.xlu0
        %v847 = vpop.trf.xlu0
        %v848 = vpop.trf.xlu0
        %v849 = vpop.trf.xlu0
        %v850 = vpop.trf.xlu0
        %v852 = vsel %vm789, %v835, 0
        %v855 = vsel %vm789, %v836, 0
        %857 = vmatpush.msra.mxu0 0.0
        %858 = vmatpush.msra.mxu0 0.0
        %859 = vmatpush.msra.mxu0 0.0
        %860 = vmatpush.msra.mxu0 0.0
        %861 = vmatpush.msra.mxu0 0.0
        %862 = vmatpush.msra.mxu0 0.0
        %863 = vmatpush.msra.mxu0 0.0
        %864 = vmatpush.msra.mxu0 0.0
        %865 = vmatpush.msra.mxu0 0.0
        %866 = vmatpush.msra.mxu0 0.0
        %867 = vmatpush.msra.mxu0 0.0
        %868 = vmatpush.msra.mxu0 0.0
        %869 = vmatpush.msra.mxu0 0.0
        %870 = vmatpush.msra.mxu0 0.0
        %871 = vmatpush.msra.mxu0 %v596
        %872 = vmatpush.msra.mxu0 %v540
        %873 = vmatmul.f32.gmra.mxu0 %v852
        %v874 = vpop.f32.mrf.mxu0
        %v875 = vadd.f32 0.0, %v874
        %876 = vmatmul.f32.gmra.mxu0 %v855
        %v877 = vpop.f32.mrf.mxu0
        %v878 = vadd.f32 0.0, %v877
        %879 = vdwg.mxu0
        %880 = vxpose.xlu0.b32.start [1/16] %v398, 128
        %881 = vxpose.xlu0.b32.cont [2/16] %v454, 128
        %882 = vxpose.xlu0.b32.cont [3/16] 0.0, 128
        %883 = vxpose.xlu0.b32.cont [4/16] 0.0, 128
        %884 = vxpose.xlu0.b32.cont [5/16] 0.0, 128
        %885 = vxpose.xlu0.b32.cont [6/16] 0.0, 128
        %886 = vxpose.xlu0.b32.cont [7/16] 0.0, 128
        %887 = vxpose.xlu0.b32.cont [8/16] 0.0, 128
        %888 = vxpose.xlu0.b32.cont [9/16] 0.0, 128
        %889 = vxpose.xlu0.b32.cont [10/16] 0.0, 128
        %890 = vxpose.xlu0.b32.cont [11/16] 0.0, 128
        %891 = vxpose.xlu0.b32.cont [12/16] 0.0, 128
        %892 = vxpose.xlu0.b32.cont [13/16] 0.0, 128
        %893 = vxpose.xlu0.b32.cont [14/16] 0.0, 128
        %894 = vxpose.xlu0.b32.cont [15/16] 0.0, 128
        %895 = vxpose.xlu0.b32.end [16/16] 0.0, 128
        %v896 = vpop.trf.xlu0
        %v897 = vpop.trf.xlu0
        %v898 = vpop.trf.xlu0
        %v899 = vpop.trf.xlu0
        %v900 = vpop.trf.xlu0
        %v901 = vpop.trf.xlu0
        %v902 = vpop.trf.xlu0
        %v903 = vpop.trf.xlu0
        %v904 = vpop.trf.xlu0
        %v905 = vpop.trf.xlu0
        %v906 = vpop.trf.xlu0
        %v907 = vpop.trf.xlu0
        %v908 = vpop.trf.xlu0
        %v909 = vpop.trf.xlu0
        %v910 = vpop.trf.xlu0
        %v911 = vpop.trf.xlu0
        %v913 = vsel %vm789, %v896, 0
        %v916 = vsel %vm789, %v897, 0
        %918 = vmatpush.msra.mxu0 0.0
        %919 = vmatpush.msra.mxu0 0.0
        %920 = vmatpush.msra.mxu0 0.0
        %921 = vmatpush.msra.mxu0 0.0
        %922 = vmatpush.msra.mxu0 0.0
        %923 = vmatpush.msra.mxu0 0.0
        %924 = vmatpush.msra.mxu0 0.0
        %925 = vmatpush.msra.mxu0 0.0
        %926 = vmatpush.msra.mxu0 0.0
        %927 = vmatpush.msra.mxu0 0.0
        %928 = vmatpush.msra.mxu0 0.0
        %929 = vmatpush.msra.mxu0 0.0
        %930 = vmatpush.msra.mxu0 0.0
        %931 = vmatpush.msra.mxu0 0.0
        %932 = vmatpush.msra.mxu0 %v598
        %933 = vmatpush.msra.mxu0 %v542
        %934 = vmatmul.f32.gmra.mxu0 %v913
        %v935 = vpop.f32.mrf.mxu0
        %v936 = vadd.f32 0.0, %v935
        %937 = vmatmul.f32.gmra.mxu0 %v916
        %v938 = vpop.f32.mrf.mxu0
        %v939 = vadd.f32 0.0, %v938
        %940 = vdwg.mxu0
        %941 = vxpose.xlu0.b32.start [1/16] %v400, 128
        %942 = vxpose.xlu0.b32.cont [2/16] %v456, 128
        %943 = vxpose.xlu0.b32.cont [3/16] 0.0, 128
        %944 = vxpose.xlu0.b32.cont [4/16] 0.0, 128
        %945 = vxpose.xlu0.b32.cont [5/16] 0.0, 128
        %946 = vxpose.xlu0.b32.cont [6/16] 0.0, 128
        %947 = vxpose.xlu0.b32.cont [7/16] 0.0, 128
        %948 = vxpose.xlu0.b32.cont [8/16] 0.0, 128
        %949 = vxpose.xlu0.b32.cont [9/16] 0.0, 128
        %950 = vxpose.xlu0.b32.cont [10/16] 0.0, 128
        %951 = vxpose.xlu0.b32.cont [11/16] 0.0, 128
        %952 = vxpose.xlu0.b32.cont [12/16] 0.0, 128
        %953 = vxpose.xlu0.b32.cont [13/16] 0.0, 128
        %954 = vxpose.xlu0.b32.cont [14/16] 0.0, 128
        %955 = vxpose.xlu0.b32.cont [15/16] 0.0, 128
        %956 = vxpose.xlu0.b32.end [16/16] 0.0, 128
        %v957 = vpop.trf.xlu0
        %v958 = vpop.trf.xlu0
        %v959 = vpop.trf.xlu0
        %v960 = vpop.trf.xlu0
        %v961 = vpop.trf.xlu0
        %v962 = vpop.trf.xlu0
        %v963 = vpop.trf.xlu0
        %v964 = vpop.trf.xlu0
        %v965 = vpop.trf.xlu0
        %v966 = vpop.trf.xlu0
        %v967 = vpop.trf.xlu0
        %v968 = vpop.trf.xlu0
        %v969 = vpop.trf.xlu0
        %v970 = vpop.trf.xlu0
        %v971 = vpop.trf.xlu0
        %v972 = vpop.trf.xlu0
        %v974 = vsel %vm789, %v957, 0
        %v977 = vsel %vm789, %v958, 0
        %979 = vmatpush.msra.mxu0 0.0
        %980 = vmatpush.msra.mxu0 0.0
        %981 = vmatpush.msra.mxu0 0.0
        %982 = vmatpush.msra.mxu0 0.0
        %983 = vmatpush.msra.mxu0 0.0
        %984 = vmatpush.msra.mxu0 0.0
        %985 = vmatpush.msra.mxu0 0.0
        %986 = vmatpush.msra.mxu0 0.0
        %987 = vmatpush.msra.mxu0 0.0
        %988 = vmatpush.msra.mxu0 0.0
        %989 = vmatpush.msra.mxu0 0.0
        %990 = vmatpush.msra.mxu0 0.0
        %991 = vmatpush.msra.mxu0 0.0
        %992 = vmatpush.msra.mxu0 0.0
        %993 = vmatpush.msra.mxu0 %v600
        %994 = vmatpush.msra.mxu0 %v544
        %995 = vmatmul.f32.gmra.mxu0 %v974
        %v996 = vpop.f32.mrf.mxu0
        %v997 = vadd.f32 0.0, %v996
        %998 = vmatmul.f32.gmra.mxu0 %v977
        %v999 = vpop.f32.mrf.mxu0
        %v1000 = vadd.f32 0.0, %v999
        %1001 = vdwg.mxu0
        %v1002 = vmul.f32 %v814, 0.5
        %v1003 = vmul.f32 %v817, 0.5
        %v1004 = vmul.f32 %v875, 0.5
        %v1005 = vmul.f32 %v878, 0.5
        %v1006 = vmul.f32 %v936, 0.5
        %v1007 = vmul.f32 %v939, 0.5
        %v1008 = vmul.f32 %v997, 0.5
        %v1009 = vmul.f32 %v1000, 0.5
        %v1010 = vsel %vm789, %v1002, -inf
        %1011 = vmax.xlane.f32.xlu0 %v1010
        %v1012 = vpop.xlane.xlu0 %1011
        %v1013 = vsel %vm789, %v1003, -inf
        %1014 = vmax.xlane.f32.xlu0 %v1013
        %v1015 = vpop.xlane.xlu0 %1014
        %v1016 = vsel %vm789, %v1004, -inf
        %1017 = vmax.xlane.f32.xlu0 %v1016
        %v1018 = vpop.xlane.xlu0 %1017
        %v1019 = vsel %vm789, %v1005, -inf
        %1020 = vmax.xlane.f32.xlu0 %v1019
        %v1021 = vpop.xlane.xlu0 %1020
        %v1022 = vsel %vm789, %v1006, -inf
        %1023 = vmax.xlane.f32.xlu0 %v1022
        %v1024 = vpop.xlane.xlu0 %1023
        %v1025 = vsel %vm789, %v1007, -inf
        %1026 = vmax.xlane.f32.xlu0 %v1025
        %v1027 = vpop.xlane.xlu0 %1026
        %v1028 = vsel %vm789, %v1008, -inf
        %1029 = vmax.xlane.f32.xlu0 %v1028
        %v1030 = vpop.xlane.xlu0 %1029
        %v1031 = vsel %vm789, %v1009, -inf
        %1032 = vmax.xlane.f32.xlu0 %v1031
        %v1033 = vpop.xlane.xlu0 %1032
        %v1034 = vsub.f32 %v1002, %v1012
        %v1035 = vsub.f32 %v1003, %v1015
        %v1036 = vsub.f32 %v1004, %v1018
        %v1037 = vsub.f32 %v1005, %v1021
        %v1038 = vsub.f32 %v1006, %v1024
        %v1039 = vsub.f32 %v1007, %v1027
        %v1040 = vsub.f32 %v1008, %v1030
        %v1041 = vsub.f32 %v1009, %v1033
        %v1042 = vmul.f32 %v1034, 1.442695
        %v1043 = vpow.pop %v1042
        %v1044 = vmul.f32 %v1035, 1.442695
        %v1045 = vpow.pop %v1044
        %v1046 = vmul.f32 %v1036, 1.442695
        %v1047 = vpow.pop %v1046
        %v1048 = vmul.f32 %v1037, 1.442695
        %v1049 = vpow.pop %v1048
        %v1050 = vmul.f32 %v1038, 1.442695
        %v1051 = vpow.pop %v1050
        %v1052 = vmul.f32 %v1039, 1.442695
        %v1053 = vpow.pop %v1052
        %v1054 = vmul.f32 %v1040, 1.442695
        %v1055 = vpow.pop %v1054
        %v1056 = vmul.f32 %v1041, 1.442695
        %v1057 = vpow.pop %v1056
        %v1058 = vsel %vm789, %v1043, 0.0
        %1059 = vadd.xlane.f32.xlu0 %v1058
        %v1060 = vpop.xlane.xlu0 %1059
        %v1061 = vsel %vm789, %v1045, 0.0
        %1062 = vadd.xlane.f32.xlu0 %v1061
        %v1063 = vpop.xlane.xlu0 %1062
        %v1064 = vsel %vm789, %v1047, 0.0
        %1065 = vadd.xlane.f32.xlu0 %v1064
        %v1066 = vpop.xlane.xlu0 %1065
        %v1067 = vsel %vm789, %v1049, 0.0
        %1068 = vadd.xlane.f32.xlu0 %v1067
        %v1069 = vpop.xlane.xlu0 %1068
        %v1070 = vsel %vm789, %v1051, 0.0
        %1071 = vadd.xlane.f32.xlu0 %v1070
        %v1072 = vpop.xlane.xlu0 %1071
        %v1073 = vsel %vm789, %v1053, 0.0
        %1074 = vadd.xlane.f32.xlu0 %v1073
        %v1075 = vpop.xlane.xlu0 %1074
        %v1076 = vsel %vm789, %v1055, 0.0
        %1077 = vadd.xlane.f32.xlu0 %v1076
        %v1078 = vpop.xlane.xlu0 %1077
        %v1079 = vsel %vm789, %v1057, 0.0
        %1080 = vadd.xlane.f32.xlu0 %v1079
        %v1081 = vpop.xlane.xlu0 %1080
        %v1082 = vrcp.pop %v1060
        %v1083 = vrcp.pop %v1063
        %v1084 = vrcp.pop %v1066
        %v1085 = vrcp.pop %v1069
        %v1086 = vrcp.pop %v1072
        %v1087 = vrcp.pop %v1075
        %v1088 = vrcp.pop %v1078
        %v1089 = vrcp.pop %v1081
        %v1090 = vmul.f32 %v1043, %v1082
        %v1091 = vmul.f32 %v1045, %v1083
        %v1092 = vmul.f32 %v1047, %v1084
        %v1093 = vmul.f32 %v1049, %v1085
        %v1094 = vmul.f32 %v1051, %v1086
        %v1095 = vmul.f32 %v1053, %v1087
        %v1096 = vmul.f32 %v1055, %v1088
        %v1097 = vmul.f32 %v1057, %v1089
        %v1099 = vsel %vm789, %v1090, 0
        %v1102 = vsel %vm789, %v1091, 0
        %v1105 = vsel %vm789, %v694, 0
        %v1108 = vsel %vm789, %v750, 0
        %1110 = vmatpush.xpose.msra.mxu0 0.0
        %1111 = vmatpush.xpose.msra.mxu0 0.0
        %1112 = vmatpush.xpose.msra.mxu0 0.0
        %1113 = vmatpush.xpose.msra.mxu0 0.0
        %1114 = vmatpush.xpose.msra.mxu0 0.0
        %1115 = vmatpush.xpose.msra.mxu0 0.0
        %1116 = vmatpush.xpose.msra.mxu0 0.0
        %1117 = vmatpush.xpose.msra.mxu0 0.0
        %1118 = vmatpush.xpose.msra.mxu0 0.0
        %1119 = vmatpush.xpose.msra.mxu0 0.0
        %1120 = vmatpush.xpose.msra.mxu0 0.0
        %1121 = vmatpush.xpose.msra.mxu0 0.0
        %1122 = vmatpush.xpose.msra.mxu0 0.0
        %1123 = vmatpush.xpose.msra.mxu0 0.0
        %1124 = vmatpush.xpose.msra.mxu0 %v1108
        %1125 = vmatpush.xpose.msra.mxu0 %v1105
        %1126 = vmatmul.f32.gmra.mxu0 %v1099
        %v1127 = vpop.f32.mrf.mxu0
        %v1128 = vadd.f32 0.0, %v1127
        %1129 = vmatmul.f32.gmra.mxu0 %v1102
        %v1130 = vpop.f32.mrf.mxu0
        %v1131 = vadd.f32 0.0, %v1130
        %1132 = vdwg.mxu0
        %v1134 = vsel %vm789, %v1092, 0
        %v1137 = vsel %vm789, %v1093, 0
        %v1140 = vsel %vm789, %v696, 0
        %v1143 = vsel %vm789, %v752, 0
        %1145 = vmatpush.xpose.msra.mxu0 0.0
        %1146 = vmatpush.xpose.msra.mxu0 0.0
        %1147 = vmatpush.xpose.msra.mxu0 0.0
        %1148 = vmatpush.xpose.msra.mxu0 0.0
        %1149 = vmatpush.xpose.msra.mxu0 0.0
        %1150 = vmatpush.xpose.msra.mxu0 0.0
        %1151 = vmatpush.xpose.msra.mxu0 0.0
        %1152 = vmatpush.xpose.msra.mxu0 0.0
        %1153 = vmatpush.xpose.msra.mxu0 0.0
        %1154 = vmatpush.xpose.msra.mxu0 0.0
        %1155 = vmatpush.xpose.msra.mxu0 0.0
        %1156 = vmatpush.xpose.msra.mxu0 0.0
        %1157 = vmatpush.xpose.msra.mxu0 0.0
        %1158 = vmatpush.xpose.msra.mxu0 0.0
        %1159 = vmatpush.xpose.msra.mxu0 %v1143
        %1160 = vmatpush.xpose.msra.mxu0 %v1140
        %1161 = vmatmul.f32.gmra.mxu0 %v1134
        %v1162 = vpop.f32.mrf.mxu0
        %v1163 = vadd.f32 0.0, %v1162
        %1164 = vmatmul.f32.gmra.mxu0 %v1137
        %v1165 = vpop.f32.mrf.mxu0
        %v1166 = vadd.f32 0.0, %v1165
        %1167 = vdwg.mxu0
        %v1169 = vsel %vm789, %v1094, 0
        %v1172 = vsel %vm789, %v1095, 0
        %v1175 = vsel %vm789, %v698, 0
        %v1178 = vsel %vm789, %v754, 0
        %1180 = vmatpush.xpose.msra.mxu0 0.0
        %1181 = vmatpush.xpose.msra.mxu0 0.0
        %1182 = vmatpush.xpose.msra.mxu0 0.0
        %1183 = vmatpush.xpose.msra.mxu0 0.0
        %1184 = vmatpush.xpose.msra.mxu0 0.0
        %1185 = vmatpush.xpose.msra.mxu0 0.0
        %1186 = vmatpush.xpose.msra.mxu0 0.0
        %1187 = vmatpush.xpose.msra.mxu0 0.0
        %1188 = vmatpush.xpose.msra.mxu0 0.0
        %1189 = vmatpush.xpose.msra.mxu0 0.0
        %1190 = vmatpush.xpose.msra.mxu0 0.0
        %1191 = vmatpush.xpose.msra.mxu0 0.0
        %1192 = vmatpush.xpose.msra.mxu0 0.0
        %1193 = vmatpush.xpose.msra.mxu0 0.0
        %1194 = vmatpush.xpose.msra.mxu0 %v1178
        %1195 = vmatpush.xpose.msra.mxu0 %v1175
        %1196 = vmatmul.f32.gmra.mxu0 %v1169
        %v1197 = vpop.f32.mrf.mxu0
        %v1198 = vadd.f32 0.0, %v1197
        %1199 = vmatmul.f32.gmra.mxu0 %v1172
        %v1200 = vpop.f32.mrf.mxu0
        %v1201 = vadd.f32 0.0, %v1200
        %1202 = vdwg.mxu0
        %v1204 = vsel %vm789, %v1096, 0
        %v1207 = vsel %vm789, %v1097, 0
        %v1210 = vsel %vm789, %v700, 0
        %v1213 = vsel %vm789, %v756, 0
        %1215 = vmatpush.xpose.msra.mxu0 0.0
        %1216 = vmatpush.xpose.msra.mxu0 0.0
        %1217 = vmatpush.xpose.msra.mxu0 0.0
        %1218 = vmatpush.xpose.msra.mxu0 0.0
        %1219 = vmatpush.xpose.msra.mxu0 0.0
        %1220 = vmatpush.xpose.msra.mxu0 0.0
        %1221 = vmatpush.xpose.msra.mxu0 0.0
        %1222 = vmatpush.xpose.msra.mxu0 0.0
        %1223 = vmatpush.xpose.msra.mxu0 0.0
        %1224 = vmatpush.xpose.msra.mxu0 0.0
        %1225 = vmatpush.xpose.msra.mxu0 0.0
        %1226 = vmatpush.xpose.msra.mxu0 0.0
        %1227 = vmatpush.xpose.msra.mxu0 0.0
        %1228 = vmatpush.xpose.msra.mxu0 0.0
        %1229 = vmatpush.xpose.msra.mxu0 %v1213
        %1230 = vmatpush.xpose.msra.mxu0 %v1210
        %1231 = vmatmul.f32.gmra.mxu0 %v1204
        %v1232 = vpop.f32.mrf.mxu0
        %v1233 = vadd.f32 0.0, %v1232
        %1234 = vmatmul.f32.gmra.mxu0 %v1207
        %v1235 = vpop.f32.mrf.mxu0
        %v1236 = vadd.f32 0.0, %v1235
        %1237 = vdwg.mxu0
        %v1238 = vrot.slane %v1198, 4
        %v1239 = vsel %vm345, %v1238, %v1128
        %v1240 = vrot.slane %v1128, 4
        %v1241 = vsel %vm345, %v1198, %v1240
        %v1243 = vunpack.c.l.s4 1983009808
        %v1244 = vunpack.c.0.s8 %v1243
        %v1245 = vperm.slane %v1239, %v1244
        %v1247 = vunpack.c.l.s4 1983009808
        %v1248 = vunpack.c.0.s8 %v1247
        %v1249 = vperm.slane %v1241, %v1248
        %v1250 = vrot.slane %v1233, 4
        %v1251 = vsel %vm345, %v1250, %v1163
        %v1252 = vrot.slane %v1163, 4
        %v1253 = vsel %vm345, %v1233, %v1252
        %v1255 = vunpack.c.l.s4 1983009808
        %v1256 = vunpack.c.0.s8 %v1255
        %v1257 = vperm.slane %v1251, %v1256
        %v1259 = vunpack.c.l.s4 1983009808
        %v1260 = vunpack.c.0.s8 %v1259
        %v1261 = vperm.slane %v1253, %v1260
        %v1262 = vrot.slane %v1257, 4
        %v1263 = vsel %vm345, %v1262, %v1245
        %v1264 = vrot.slane %v1245, 4
        %v1265 = vsel %vm345, %v1257, %v1264
        %v1267 = vunpack.c.l.s4 1934713408
        %v1268 = vunpack.c.0.s8 %v1267
        %v1269 = vperm.slane %v1263, %v1268
        %v1271 = vunpack.c.l.s4 1934713408
        %v1272 = vunpack.c.0.s8 %v1271
        %v1273 = vperm.slane %v1265, %v1272
        %v1274 = vrot.slane %v1261, 4
        %v1275 = vsel %vm345, %v1274, %v1249
        %v1276 = vrot.slane %v1249, 4
        %v1277 = vsel %vm345, %v1261, %v1276
        %v1279 = vunpack.c.l.s4 1934713408
        %v1280 = vunpack.c.0.s8 %v1279
        %v1281 = vperm.slane %v1275, %v1280
        %v1283 = vunpack.c.l.s4 1934713408
        %v1284 = vunpack.c.0.s8 %v1283
        %v1285 = vperm.slane %v1277, %v1284
        %v1286 = vrot.slane %v1269, 4
        %v1287 = vsel %vm345, 0.0, %v1286
        %v1288 = vrot.slane %v1273, 4
        %v1289 = vsel %vm345, 0.0, %v1288
        %v1290 = vrot.slane %v1281, 4
        %v1291 = vsel %vm345, 0.0, %v1290
        %v1292 = vrot.slane %v1285, 4
        %v1293 = vsel %vm345, 0.0, %v1292
        %v1294 = vrot.slane %v1201, 4
        %v1295 = vsel %vm345, %v1294, %v1131
        %v1296 = vrot.slane %v1131, 4
        %v1297 = vsel %vm345, %v1201, %v1296
        %v1299 = vunpack.c.l.s4 1983009808
        %v1300 = vunpack.c.0.s8 %v1299
        %v1301 = vperm.slane %v1295, %v1300
        %v1303 = vunpack.c.l.s4 1983009808
        %v1304 = vunpack.c.0.s8 %v1303
        %v1305 = vperm.slane %v1297, %v1304
        %v1306 = vrot.slane %v1236, 4
        %v1307 = vsel %vm345, %v1306, %v1166
        %v1308 = vrot.slane %v1166, 4
        %v1309 = vsel %vm345, %v1236, %v1308
        %v1311 = vunpack.c.l.s4 1983009808
        %v1312 = vunpack.c.0.s8 %v1311
        %v1313 = vperm.slane %v1307, %v1312
        %v1315 = vunpack.c.l.s4 1983009808
        %v1316 = vunpack.c.0.s8 %v1315
        %v1317 = vperm.slane %v1309, %v1316
        %v1318 = vrot.slane %v1313, 4
        %v1319 = vsel %vm345, %v1318, %v1301
        %v1320 = vrot.slane %v1301, 4
        %v1321 = vsel %vm345, %v1313, %v1320
        %v1323 = vunpack.c.l.s4 1934713408
        %v1324 = vunpack.c.0.s8 %v1323
        %v1325 = vperm.slane %v1319, %v1324
        %v1327 = vunpack.c.l.s4 1934713408
        %v1328 = vunpack.c.0.s8 %v1327
        %v1329 = vperm.slane %v1321, %v1328
        %v1330 = vrot.slane %v1317, 4
        %v1331 = vsel %vm345, %v1330, %v1305
        %v1332 = vrot.slane %v1305, 4
        %v1333 = vsel %vm345, %v1317, %v1332
        %v1335 = vunpack.c.l.s4 1934713408
        %v1336 = vunpack.c.0.s8 %v1335
        %v1337 = vperm.slane %v1331, %v1336
        %v1339 = vunpack.c.l.s4 1934713408
        %v1340 = vunpack.c.0.s8 %v1339
        %v1341 = vperm.slane %v1333, %v1340
        %v1342 = vrot.slane %v1325, 4
        %v1343 = vsel %vm345, 0.0, %v1342
        %v1344 = vrot.slane %v1329, 4
        %v1345 = vsel %vm345, 0.0, %v1344
        %v1346 = vrot.slane %v1337, 4
        %v1347 = vsel %vm345, 0.0, %v1346
        %v1348 = vrot.slane %v1341, 4
        %v1349 = vsel %vm345, 0.0, %v1348
        %1351 = vrot.lane.b32.xlu0 %v1287, 16
        %v1352 = vpop.permute.xlu0 %1351
        %1355 = vrot.lane.b32.xlu0 %v1273, 32
        %v1356 = vpop.permute.xlu0 %1355
        %1359 = vrot.lane.b32.xlu0 %v1289, 48
        %v1360 = vpop.permute.xlu0 %1359
        %1363 = vrot.lane.b32.xlu0 %v1281, 64
        %v1364 = vpop.permute.xlu0 %1363
        %1367 = vrot.lane.b32.xlu0 %v1291, 80
        %v1368 = vpop.permute.xlu0 %1367
        %1371 = vrot.lane.b32.xlu0 %v1285, 96
        %v1372 = vpop.permute.xlu0 %1371
        %1375 = vrot.lane.b32.xlu0 %v1293, 112
        %v1376 = vpop.permute.xlu0 %1375
        %1379 = vrot.lane.b32.xlu0 %v1343, 16
        %v1380 = vpop.permute.xlu0 %1379
        %1383 = vrot.lane.b32.xlu0 %v1329, 32
        %v1384 = vpop.permute.xlu0 %1383
        %1387 = vrot.lane.b32.xlu0 %v1345, 48
        %v1388 = vpop.permute.xlu0 %1387
        %1391 = vrot.lane.b32.xlu0 %v1337, 64
        %v1392 = vpop.permute.xlu0 %1391
        %1395 = vrot.lane.b32.xlu0 %v1347, 80
        %v1396 = vpop.permute.xlu0 %1395
        %1399 = vrot.lane.b32.xlu0 %v1341, 96
        %v1400 = vpop.permute.xlu0 %1399
        %1403 = vrot.lane.b32.xlu0 %v1349, 112
        %v1404 = vpop.permute.xlu0 %1403
        %v1406 = vsel %vm789, %v1269, %v1352
        %vm1407 = vcmask 261120
        %v1408 = vsel %vm1407, %v1406, %v1356
        %vm1409 = vcmask 392192
        %v1410 = vsel %vm1409, %v1408, %v1360
        %vm1411 = vcmask 523264
        %v1412 = vsel %vm1411, %v1410, %v1364
        %vm1413 = vcmask 654336
        %v1414 = vsel %vm1413, %v1412, %v1368
        %vm1415 = vcmask 785408
        %v1416 = vsel %vm1415, %v1414, %v1372
        %vm1417 = vcmask 916480
        %v1418 = vsel %vm1417, %v1416, %v1376
        %v1419 = vsel %vm789, %v1325, %v1380
        %v1420 = vsel %vm1407, %v1419, %v1384
        %v1421 = vsel %vm1409, %v1420, %v1388
        %v1422 = vsel %vm1411, %v1421, %v1392
        %v1423 = vsel %vm1413, %v1422, %v1396
        %v1424 = vsel %vm1415, %v1423, %v1400
        %v1425 = vsel %vm1417, %v1424, %v1404
        %v1426 = vld [vmem:[%s3] sm:$0xf]
        %v1427 = vld [vmem:[%s4] sm:$0xf]
        %1429 = vset.pattern.permute.xlu0 0
        %1430 = vperm.xlu0 %1429, %v1427
        %v1431 = vpop.permute.xlu0 %1430
        %v1434 = vsel %vm242, %v1426, 0
        %v1437 = vsel %vm249, %v1418, 0
        %v1440 = vsel %vm249, %v1425, 0
        %1442 = vmatpush.msra.mxu0 0.0
        %1443 = vmatpush.msra.mxu0 0.0
        %1444 = vmatpush.msra.mxu0 0.0
        %1445 = vmatpush.msra.mxu0 0.0
        %1446 = vmatpush.msra.mxu0 0.0
        %1447 = vmatpush.msra.mxu0 0.0
        %1448 = vmatpush.msra.mxu0 0.0
        %1449 = vmatpush.msra.mxu0 0.0
        %1450 = vmatpush.msra.mxu0 0.0
        %1451 = vmatpush.msra.mxu0 0.0
        %1452 = vmatpush.msra.mxu0 0.0
        %1453 = vmatpush.msra.mxu0 0.0
        %1454 = vmatpush.msra.mxu0 0.0
        %1455 = vmatpush.msra.mxu0 0.0
        %1456 = vmatpush.msra.mxu0 0.0
        %1457 = vmatpush.msra.mxu0 %v1437
        %1458 = vmatmul.f32.gmra.mxu0 %v1434
        %v1459 = vpop.f32.mrf.mxu0
        %v1460 = vadd.f32 %v1431, %v1459
        %1461 = vdwg.mxu0
        %1462 = vmatpush.msra.mxu0 0.0
        %1463 = vmatpush.msra.mxu0 0.0
        %1464 = vmatpush.msra.mxu0 0.0
        %1465 = vmatpush.msra.mxu0 0.0
        %1466 = vmatpush.msra.mxu0 0.0
        %1467 = vmatpush.msra.mxu0 0.0
        %1468 = vmatpush.msra.mxu0 0.0
        %1469 = vmatpush.msra.mxu0 0.0
        %1470 = vmatpush.msra.mxu0 0.0
        %1471 = vmatpush.msra.mxu0 0.0
        %1472 = vmatpush.msra.mxu0 0.0
        %1473 = vmatpush.msra.mxu0 0.0
        %1474 = vmatpush.msra.mxu0 0.0
        %1475 = vmatpush.msra.mxu0 0.0
        %1476 = vmatpush.msra.mxu0 0.0
        %1477 = vmatpush.msra.mxu0 %v1440
        %1478 = vmatmul.f32.gmra.mxu0 %v1434
        %v1479 = vpop.f32.mrf.mxu0
        %v1480 = vadd.f32 %v1431, %v1479
        %1481 = vdwg.mxu0
        %1482 = vst [vmem:[#allocation1] ss:$2 sm:$0xff] %v223
        %v1483 = vld.sshfl [vmem:[#allocation1] sm:$0xff pattern:$0x75316420]
        %v1484 = vld.sshfl [vmem:[#allocation1 + $0x8] sm:$0xff pattern:$0x75316420]
        %v1487 = vadd.f32 %v1460, %v1483
        %v1488 = vadd.f32 %v1480, %v1484
        %v1491 = vrot.slane %v1488, 4
        %v1492 = vsel %vm249, %v1487, %v1491
        %1494 = vst [vmem:[%s217] sm:$0xff] %v1492
        %s1495 = sand.u32 %s137, 1
        %s1496 = scalar_lea.sflag [#allocation3], %s1495
        %s1497 = sand.u32 %s137, 1
        %s1498 = smul.addr %s1497, 8
        %s1499 = scalar_lea.vmem [#allocation2], %s1498
        // Predicated region
        $region41: #{tpu_custom_call.1} parent=39 // pred_check
          %p1500 = pneg %p147
        $region42: #{tpu_custom_call.1} parent=39 // pred_check_branch
          %1502 = sbr.rel (%p1500) target = $region44
        $region43: #{tpu_custom_call.1} parent=39 // pred_region
          %1504 = vsyncadd %s1496, 0
          %s1505 = smul.addr %s19, 2
          %s1506 = smul.addr %s1505, 4
          %s1507 = scalar_lea.hbm %s5, %s1506
          %s1509 = sshll.u32 %s1499, 4
          %s1510 = int_to_ptr.vmem [resolvable:$true] %s1509
          %s1511 = sshll.u32 %s1507, 4
          %s1512 = int_to_ptr.hbm [resolvable:$true] %s1511
          %1514 = dma.vmem_to_hbm [thread:$0]  %s1510, 128, %s1512, %s1496
        $region44: #{tpu_custom_call.1} parent=39 // pred_fallthru
          _
      $region40: #{tpu_custom_call.1} parent=5 // pred_fallthru
        _
      %p1515 = scmp.le.s32.totalorder 2, %s14
      // Predicated region
      $region45: #{tpu_custom_call.1} parent=5 // pred_check
        %p1516 = pneg %p1515
      $region46: #{tpu_custom_call.1} parent=5 // pred_check_branch
        %1518 = sbr.rel (%p1516) target = $region48
      $region47: #{tpu_custom_call.1} parent=5 // pred_region
        %s1519 = ssub.s32 %s14, 2
        // Predicated region
        $region49: #{tpu_custom_call.1} parent=47 // pred_check
          %p1520 = pneg %p153
        $region50: #{tpu_custom_call.1} parent=47 // pred_check_branch
          %1522 = sbr.rel (%p1520) target = $region52
        $region51: #{tpu_custom_call.1} parent=47 // pred_region
          %s1523 = sand.u32 %s138, 1
          %s1524 = scalar_lea.sflag [#allocation3], %s1523
          %s1525 = sand.u32 %s138, 1
          %s1526 = smul.addr %s1525, 8
          %s1527 = scalar_lea.vmem [#allocation2], %s1526
          %1529 = dma.done %s1524, 128
        $region52: #{tpu_custom_call.1} parent=47 // pred_fallthru
          _
      $region48: #{tpu_custom_call.1} parent=5 // pred_fallthru
        _
    $region6: #{tpu_custom_call.1} parent=1 // loop_footer
      %s18 = sadd.s32 1, %s14
    $region7: #{tpu_custom_call.1} parent=1 // loop_footer_branch
      %13 = sbr.rel target = $region3
    $region8: #{tpu_custom_call.1} parent=1 // loop_exit
      _
    %1530 = vsyncpa [#allocation3], 1
    %s1531 = scalar_lea.sflag [#allocation3], 1
    %1532 = vsyncpa %s1531, 1

</llo_original>
